<compile_context>
chip_gen: v6e
topology: v6e:2x2x1
jax: 0.10.0
libtpu: 0.0.40
codegen_flags: <defaults>
</compile_context>

<pallas_src>
import jax
import jax.numpy as jnp
from jax.experimental import pallas as pl
from jax.experimental.pallas import tpu as pltpu

INPUT_DIM = 8
ACTION_DIM = 2
ACTION_BOUND = 2.0
H1, H2, H3 = 64, 32, 16
OUT_DIM = 2 * ACTION_DIM  # sublane-packed [mu | std]


def _actor_kernel(x_ref,
                  w1_ref, b1_ref,
                  w2_ref, b2_ref,
                  w3_ref, b3_ref,
                  wh_ref, bh_ref,
                  out_ref):
    # x_ref: (INPUT_DIM, TB), batch lane-dense. Compute in f32 (cast is a no-op
    # for f32 input; supports bf16 state fed from upstream on v6e/v7x).
    x = x_ref[...].astype(jnp.float32)

    # hidden layer 1: Linear(input_dim, 64) + ReLU          -> (64, TB)
    h = jnp.dot(w1_ref[...], x, preferred_element_type=jnp.float32) + b1_ref[...]
    h = jnp.maximum(h, 0.0)

    # hidden layer 2: Linear(64, 32) + ReLU                 -> (32, TB)
    h = jnp.dot(w2_ref[...], h, preferred_element_type=jnp.float32) + b2_ref[...]
    h = jnp.maximum(h, 0.0)

    # hidden layer 3: Linear(32, 16) + ReLU                 -> (16, TB)
    h = jnp.dot(w3_ref[...], h, preferred_element_type=jnp.float32) + b3_ref[...]
    h = jnp.maximum(h, 0.0)

    # fused heads: Linear(16, 2*action_dim)                 -> (2*AD, TB)
    # rows [0:AD]  -> mu head, rows [AD:2*AD] -> std head
    z = jnp.dot(wh_ref[...], h, preferred_element_type=jnp.float32) + bh_ref[...]

    z_mu = z[:ACTION_DIM, :]
    z_std = z[ACTION_DIM:, :]

    mu = ACTION_BOUND * jnp.tanh(z_mu)
    # numerically stable softplus: max(z, 0) + log1p(exp(-|z|))
    sp = jnp.maximum(z_std, 0.0) + jnp.log1p(jnp.exp(-jnp.abs(z_std)))

    out_ref[:ACTION_DIM, :] = mu.astype(out_ref.dtype)
    out_ref[ACTION_DIM:, :] = sp.astype(out_ref.dtype)


def _round_up(n, m):
    return (n + m - 1) // m * m


def actor_forward(state, params, *, block_batch=2048):
    """state: [B, input_dim]; params: PyTorch-layout weights [out,in], biases [out].

    Returns (mu, std), each [B, ACTION_DIM] float32.
    """
    B = state.shape[0]

    w1, w2, w3 = params["w1"], params["w2"], params["w3"]
    b1 = params["b1"].reshape(H1, 1)
    b2 = params["b2"].reshape(H2, 1)
    b3 = params["b3"].reshape(H3, 1)

    # Fuse the two tiny heads into one weight/bias (done once per call).
    wh = jnp.concatenate([params["wmu"], params["wstd"]], axis=0)            # (2*AD, 16)
    bh = jnp.concatenate([params["bmu"], params["bstd"]], axis=0).reshape(OUT_DIM, 1)

    # Batch tile: batch lives on the lane axis -> multiples of 128.  Cap the
    # tile so the grid has >= 2 parallel steps when possible (v7x has 2 TCs).
    b128 = _round_up(max(B, 1), 128)
    half = _round_up(-(-b128 // 2), 128)
    tb = min(block_batch, max(128, half))
    b_pad = _round_up(b128, tb)

    x = state
    if b_pad != B:
        x = jnp.pad(x, ((0, b_pad - B), (0, 0)))
    xT = x.T  # (INPUT_DIM, b_pad): feature-major, lane-dense in batch (plumbing only)

    grid = (b_pad // tb,)

    # Weights/biases: constant index_map -> stay VMEM-resident across the grid.
    def resident(a):
        nd = a.ndim
        return pl.BlockSpec(a.shape, lambda i, nd=nd: (0,) * nd)

    flops = 2 * b_pad * (INPUT_DIM * H1 + H1 * H2 + H2 * H3 + H3 * OUT_DIM)
    transcendentals = 3 * b_pad * ACTION_DIM  # tanh (mu rows) + exp + log1p (std rows)
    bytes_accessed = (int(xT.size) * xT.dtype.itemsize
                      + sum(int(a.size) * a.dtype.itemsize
                            for a in (w1, b1, w2, b2, w3, b3, wh, bh))
                      + b_pad * OUT_DIM * 4)

    packed = pl.pallas_call(
        _actor_kernel,
        out_shape=jax.ShapeDtypeStruct((OUT_DIM, b_pad), jnp.float32),
        grid=grid,
        in_specs=[
            pl.BlockSpec((INPUT_DIM, tb), lambda i: (0, i)),
            resident(w1), resident(b1),
            resident(w2), resident(b2),
            resident(w3), resident(b3),
            resident(wh), resident(bh),
        ],
        out_specs=pl.BlockSpec((OUT_DIM, tb), lambda i: (0, i)),
        compiler_params=pltpu.CompilerParams(
            dimension_semantics=("parallel",)),
        cost_estimate=pl.CostEstimate(
            flops=flops,
            transcendentals=transcendentals,
            bytes_accessed=bytes_accessed),
    )(xT, w1, b1, w2, b2, w3, b3, wh, bh)

    mu = packed[:ACTION_DIM, :B].T
    std = packed[ACTION_DIM:, :B].T
    return mu, std


def init_params(key):
    """Deterministic init. PyTorch nn.Linear layout: W [out, in], b [out]."""
    ks = jax.random.split(key, 10)

    def lin(kw, kb, fan_in, fan_out):
        bound = 1.0 / jnp.sqrt(fan_in)
        w = jax.random.uniform(kw, (fan_out, fan_in), jnp.float32, -bound, bound)
        b = jax.random.uniform(kb, (fan_out,), jnp.float32, -bound, bound)
        return w, b

    w1, b1 = lin(ks[0], ks[1], INPUT_DIM, H1)
    w2, b2 = lin(ks[2], ks[3], H1, H2)
    w3, b3 = lin(ks[4], ks[5], H2, H3)
    wmu, bmu = lin(ks[6], ks[7], H3, ACTION_DIM)
    wstd, bstd = lin(ks[8], ks[9], H3, ACTION_DIM)
    return dict(w1=w1, b1=b1, w2=w2, b2=b2, w3=w3, b3=b3,
                wmu=wmu, bmu=bmu, wstd=wstd, bstd=bstd)


def _reference(state, p):
    relu = lambda x: jnp.maximum(x, 0.0)
    h = relu(state @ p["w1"].T + p["b1"])
    h = relu(h @ p["w2"].T + p["b2"])
    h = relu(h @ p["w3"].T + p["b3"])
    mu = ACTION_BOUND * jnp.tanh(h @ p["wmu"].T + p["bmu"])
    std = jax.nn.softplus(h @ p["wstd"].T + p["bstd"])
    return mu, std


if __name__ == "__main__":
    key = jax.random.PRNGKey(0)
    k_state, k_params = jax.random.split(key)
    params = init_params(k_params)

    # main run
    B = 8
    state = jax.random.normal(k_state, (B, INPUT_DIM), jnp.float32)
    mu, std = actor_forward(state, params)
    jax.block_until_ready((mu, std))

    mu_ref, std_ref = _reference(state, params)
    assert mu.shape == (B, ACTION_DIM) and std.shape == (B, ACTION_DIM)
    assert jnp.allclose(mu, mu_ref, atol=1e-5, rtol=1e-5)
    assert jnp.allclose(std, std_ref, atol=1e-5, rtol=1e-5)

    # tail-padding path (B not a multiple of the lane tile)
    B2 = 5
    state2 = jax.random.normal(k_state, (B2, INPUT_DIM), jnp.float32)
    mu2, std2 = actor_forward(state2, params)
    jax.block_until_ready((mu2, std2))
    mu2_ref, std2_ref = _reference(state2, params)
    assert jnp.allclose(mu2, mu2_ref, atol=1e-5, rtol=1e-5)
    assert jnp.allclose(std2, std2_ref, atol=1e-5, rtol=1e-5)

    # multi-tile path (exercises the parallel grid)
    B3 = 300
    state3 = jax.random.normal(k_state, (B3, INPUT_DIM), jnp.float32)
    mu3, std3 = actor_forward(state3, params, block_batch=128)
    jax.block_until_ready((mu3, std3))
    mu3_ref, std3_ref = _reference(state3, params)
    assert jnp.allclose(mu3, mu3_ref, atol=1e-5, rtol=1e-5)
    assert jnp.allclose(std3, std3_ref, atol=1e-5, rtol=1e-5)

    print("KERNEL_OK")
</pallas_src>

<mosaic_0001>
module attributes {stable_mosaic.version = 11 : i64} {
  func.func @_actor_kernel(%arg0: i32, %arg1: memref<8x128xf32, #tpu.memory_space<vmem>>, %arg2: memref<64x8xf32, #tpu.memory_space<vmem>>, %arg3: memref<64x1xf32, #tpu.memory_space<vmem>>, %arg4: memref<32x64xf32, #tpu.memory_space<vmem>>, %arg5: memref<32x1xf32, #tpu.memory_space<vmem>>, %arg6: memref<16x32xf32, #tpu.memory_space<vmem>>, %arg7: memref<16x1xf32, #tpu.memory_space<vmem>>, %arg8: memref<4x16xf32, #tpu.memory_space<vmem>>, %arg9: memref<4x1xf32, #tpu.memory_space<vmem>>, %arg10: memref<4x128xf32, #tpu.memory_space<vmem>>) attributes {dimension_semantics = [#tpu.dimension_semantics<parallel>], iteration_bounds = array<i64: 1>, scalar_prefetch = 0 : i64, scratch_operands = 0 : i64, tpu.core_type = #tpu.core_type<tc>, window_params = [{transform_indices = @transform_0, window_bounds = array<i64: 8, 128>}, {pipeline_mode = #tpu.pipeline_mode<synchronous>, transform_indices = @transform_1, window_bounds = array<i64: 64, 8>}, {pipeline_mode = #tpu.pipeline_mode<synchronous>, transform_indices = @transform_2, window_bounds = array<i64: 64, 1>}, {pipeline_mode = #tpu.pipeline_mode<synchronous>, transform_indices = @transform_3, window_bounds = array<i64: 32, 64>}, {pipeline_mode = #tpu.pipeline_mode<synchronous>, transform_indices = @transform_4, window_bounds = array<i64: 32, 1>}, {pipeline_mode = #tpu.pipeline_mode<synchronous>, transform_indices = @transform_5, window_bounds = array<i64: 16, 32>}, {pipeline_mode = #tpu.pipeline_mode<synchronous>, transform_indices = @transform_6, window_bounds = array<i64: 16, 1>}, {pipeline_mode = #tpu.pipeline_mode<synchronous>, transform_indices = @transform_7, window_bounds = array<i64: 4, 16>}, {pipeline_mode = #tpu.pipeline_mode<synchronous>, transform_indices = @transform_8, window_bounds = array<i64: 4, 1>}, {transform_indices = @transform_9, window_bounds = array<i64: 4, 128>}]} {
    %c0 = arith.constant 0 : index
    %c0_0 = arith.constant 0 : index
    %0 = vector.load %arg1[%c0, %c0_0] : memref<8x128xf32, #tpu.memory_space<vmem>>, vector<8x128xf32>
    %c0_1 = arith.constant 0 : index
    %c0_2 = arith.constant 0 : index
    %1 = vector.load %arg2[%c0_1, %c0_2] : memref<64x8xf32, #tpu.memory_space<vmem>>, vector<64x8xf32>
    %cst = arith.constant dense<0.000000e+00> : vector<64x128xf32>
    %2 = tpu.matmul %1, %0, %cst {dimension_numbers = #tpu.dot_dimension_numbers<[1], [0], [0], [1], [0, 0, 1, 1], [], []>} : vector<64x8xf32>, vector<8x128xf32>, vector<64x128xf32> -> vector<64x128xf32>
    %c0_3 = arith.constant 0 : index
    %c0_4 = arith.constant 0 : index
    %3 = vector.load %arg3[%c0_3, %c0_4] : memref<64x1xf32, #tpu.memory_space<vmem>>, vector<64x1xf32>
    %4 = vector.broadcast %3 : vector<64x1xf32> to vector<64x128xf32>
    %5 = arith.addf %2, %4 : vector<64x128xf32>
    %cst_5 = arith.constant 0.000000e+00 : f32
    %6 = vector.broadcast %cst_5 : f32 to vector<64x128xf32>
    %7 = arith.maximumf %5, %6 : vector<64x128xf32>
    %c0_6 = arith.constant 0 : index
    %c0_7 = arith.constant 0 : index
    %8 = vector.load %arg4[%c0_6, %c0_7] : memref<32x64xf32, #tpu.memory_space<vmem>>, vector<32x64xf32>
    %cst_8 = arith.constant dense<0.000000e+00> : vector<32x128xf32>
    %9 = tpu.matmul %8, %7, %cst_8 {dimension_numbers = #tpu.dot_dimension_numbers<[1], [0], [0], [1], [0, 0, 1, 1], [], []>} : vector<32x64xf32>, vector<64x128xf32>, vector<32x128xf32> -> vector<32x128xf32>
    %c0_9 = arith.constant 0 : index
    %c0_10 = arith.constant 0 : index
    %10 = vector.load %arg5[%c0_9, %c0_10] : memref<32x1xf32, #tpu.memory_space<vmem>>, vector<32x1xf32>
    %11 = vector.broadcast %10 : vector<32x1xf32> to vector<32x128xf32>
    %12 = arith.addf %9, %11 : vector<32x128xf32>
    %cst_11 = arith.constant 0.000000e+00 : f32
    %13 = vector.broadcast %cst_11 : f32 to vector<32x128xf32>
    %14 = arith.maximumf %12, %13 : vector<32x128xf32>
    %c0_12 = arith.constant 0 : index
    %c0_13 = arith.constant 0 : index
    %15 = vector.load %arg6[%c0_12, %c0_13] : memref<16x32xf32, #tpu.memory_space<vmem>>, vector<16x32xf32>
    %cst_14 = arith.constant dense<0.000000e+00> : vector<16x128xf32>
    %16 = tpu.matmul %15, %14, %cst_14 {dimension_numbers = #tpu.dot_dimension_numbers<[1], [0], [0], [1], [0, 0, 1, 1], [], []>} : vector<16x32xf32>, vector<32x128xf32>, vector<16x128xf32> -> vector<16x128xf32>
    %c0_15 = arith.constant 0 : index
    %c0_16 = arith.constant 0 : index
    %17 = vector.load %arg7[%c0_15, %c0_16] : memref<16x1xf32, #tpu.memory_space<vmem>>, vector<16x1xf32>
    %18 = vector.broadcast %17 : vector<16x1xf32> to vector<16x128xf32>
    %19 = arith.addf %16, %18 : vector<16x128xf32>
    %cst_17 = arith.constant 0.000000e+00 : f32
    %20 = vector.broadcast %cst_17 : f32 to vector<16x128xf32>
    %21 = arith.maximumf %19, %20 : vector<16x128xf32>
    %c0_18 = arith.constant 0 : index
    %c0_19 = arith.constant 0 : index
    %22 = vector.load %arg8[%c0_18, %c0_19] : memref<4x16xf32, #tpu.memory_space<vmem>>, vector<4x16xf32>
    %cst_20 = arith.constant dense<0.000000e+00> : vector<4x128xf32>
    %23 = tpu.matmul %22, %21, %cst_20 {dimension_numbers = #tpu.dot_dimension_numbers<[1], [0], [0], [1], [0, 0, 1, 1], [], []>} : vector<4x16xf32>, vector<16x128xf32>, vector<4x128xf32> -> vector<4x128xf32>
    %c0_21 = arith.constant 0 : index
    %c0_22 = arith.constant 0 : index
    %24 = vector.load %arg9[%c0_21, %c0_22] : memref<4x1xf32, #tpu.memory_space<vmem>>, vector<4x1xf32>
    %25 = vector.broadcast %24 : vector<4x1xf32> to vector<4x128xf32>
    %26 = arith.addf %23, %25 : vector<4x128xf32>
    %27 = vector.extract_strided_slice %26 {offsets = [0, 0], sizes = [2, 128], strides = [1, 1]} : vector<4x128xf32> to vector<2x128xf32>
    %28 = vector.extract_strided_slice %26 {offsets = [2, 0], sizes = [2, 128], strides = [1, 1]} : vector<4x128xf32> to vector<2x128xf32>
    %29 = math.tanh %27 : vector<2x128xf32>
    %cst_23 = arith.constant 2.000000e+00 : f32
    %30 = vector.broadcast %cst_23 : f32 to vector<2x128xf32>
    %31 = arith.mulf %30, %29 : vector<2x128xf32>
    %cst_24 = arith.constant 0.000000e+00 : f32
    %32 = vector.broadcast %cst_24 : f32 to vector<2x128xf32>
    %33 = arith.maximumf %28, %32 : vector<2x128xf32>
    %34 = math.absf %28 : vector<2x128xf32>
    %cst_25 = arith.constant 0.000000e+00 : f32
    %35 = vector.broadcast %cst_25 : f32 to vector<2x128xf32>
    %36 = arith.subf %35, %34 : vector<2x128xf32>
    %37 = math.exp %36 : vector<2x128xf32>
    %38 = math.log1p %37 : vector<2x128xf32>
    %39 = arith.addf %33, %38 : vector<2x128xf32>
    %c0_26 = arith.constant 0 : index
    %c0_27 = arith.constant 0 : index
    %40 = vector.load %arg10[%c0_26, %c0_27] : memref<4x128xf32, #tpu.memory_space<vmem>>, vector<2x128xf32>
    tpu.vector_store %arg10[%c0_26, %c0_27], %31 {strides = array<i32>} : memref<4x128xf32, #tpu.memory_space<vmem>>, vector<2x128xf32>,
    %c2 = arith.constant 2 : index
    %c0_28 = arith.constant 0 : index
    %41 = vector.load %arg10[%c2, %c0_28] : memref<4x128xf32, #tpu.memory_space<vmem>>, vector<2x128xf32>
    tpu.vector_store %arg10[%c2, %c0_28], %39 {strides = array<i32>} : memref<4x128xf32, #tpu.memory_space<vmem>>, vector<2x128xf32>,
    return
  }
  func.func @transform_0(%arg0: i32) -> (i32, i32) {
    %c0_i32 = arith.constant 0 : i32
    %c0_i32_0 = arith.constant 0 : i32
    return %c0_i32, %arg0 : i32, i32
  }
  func.func @transform_1(%arg0: i32) -> (i32, i32) {
    %c0_i32 = arith.constant 0 : i32
    %c0_i32_0 = arith.constant 0 : i32
    %c0_i32_1 = arith.constant 0 : i32
    return %c0_i32, %c0_i32_0 : i32, i32
  }
  func.func @transform_2(%arg0: i32) -> (i32, i32) {
    %c0_i32 = arith.constant 0 : i32
    %c0_i32_0 = arith.constant 0 : i32
    %c0_i32_1 = arith.constant 0 : i32
    return %c0_i32, %c0_i32_0 : i32, i32
  }
  func.func @transform_3(%arg0: i32) -> (i32, i32) {
    %c0_i32 = arith.constant 0 : i32
    %c0_i32_0 = arith.constant 0 : i32
    %c0_i32_1 = arith.constant 0 : i32
    return %c0_i32, %c0_i32_0 : i32, i32
  }
  func.func @transform_4(%arg0: i32) -> (i32, i32) {
    %c0_i32 = arith.constant 0 : i32
    %c0_i32_0 = arith.constant 0 : i32
    %c0_i32_1 = arith.constant 0 : i32
    return %c0_i32, %c0_i32_0 : i32, i32
  }
  func.func @transform_5(%arg0: i32) -> (i32, i32) {
    %c0_i32 = arith.constant 0 : i32
    %c0_i32_0 = arith.constant 0 : i32
    %c0_i32_1 = arith.constant 0 : i32
    return %c0_i32, %c0_i32_0 : i32, i32
  }
  func.func @transform_6(%arg0: i32) -> (i32, i32) {
    %c0_i32 = arith.constant 0 : i32
    %c0_i32_0 = arith.constant 0 : i32
    %c0_i32_1 = arith.constant 0 : i32
    return %c0_i32, %c0_i32_0 : i32, i32
  }
  func.func @transform_7(%arg0: i32) -> (i32, i32) {
    %c0_i32 = arith.constant 0 : i32
    %c0_i32_0 = arith.constant 0 : i32
    %c0_i32_1 = arith.constant 0 : i32
    return %c0_i32, %c0_i32_0 : i32, i32
  }
  func.func @transform_8(%arg0: i32) -> (i32, i32) {
    %c0_i32 = arith.constant 0 : i32
    %c0_i32_0 = arith.constant 0 : i32
    %c0_i32_1 = arith.constant 0 : i32
    return %c0_i32, %c0_i32_0 : i32, i32
  }
  func.func @transform_9(%arg0: i32) -> (i32, i32) {
    %c0_i32 = arith.constant 0 : i32
    %c0_i32_0 = arith.constant 0 : i32
    return %c0_i32, %arg0 : i32, i32
  }
}

</mosaic_0001>

<llo_original>
// kernel: tpu_custom_call.1
$region0: #{tpu_custom_call.1}
  #allocation0 [shape = 'u32[]', space=smem, size = 0x4, offset = 0x4, fixed_abs, tag = 'smem constant byte address 0x4 - core index']
  #allocation1 [shape = 'u32[144,128]{1,0:T(1,128)}', space=vmem, size = 0x12000, scoped, tag = 'internal scratch']
  %s0 = inlined_call_operand.vmem [shape: f32[8,128], index: 0, kind: input, shape index: {}]
  %s1 = inlined_call_operand.vmem [shape: f32[64,8], index: 1, kind: input, shape index: {}]
  %s2 = inlined_call_operand.vmem [shape: f32[64,1], index: 2, kind: input, shape index: {}]
  %s3 = inlined_call_operand.vmem [shape: f32[32,64], index: 3, kind: input, shape index: {}]
  %s4 = inlined_call_operand.vmem [shape: f32[32,1], index: 4, kind: input, shape index: {}]
  %s5 = inlined_call_operand.vmem [shape: f32[16,32], index: 5, kind: input, shape index: {}]
  %s6 = inlined_call_operand.vmem [shape: f32[16,1], index: 6, kind: input, shape index: {}]
  %s7 = inlined_call_operand.vmem [shape: f32[4,16], index: 7, kind: input, shape index: {}]
  %s8 = inlined_call_operand.vmem [shape: f32[4,1], index: 8, kind: input, shape index: {}]
  %s9 = inlined_call_operand.hbm [shape: f32[4,128], index: 9, kind: output, shape index: {}]
  %s10 = sld [smem:[#allocation0]]
  $region46: #{tpu_custom_call.1} parent=0
    _
  %s12 = ssub.s32 1, %s10
  %s13 = scalar_select 0, %s12, %s10
  $region1: #{tpu_custom_call.1} parent=0
    #allocation2 [shape = 'u8[2048]{0}', space=vmem, size = 0x800, scoped, tag = 'output window, operand 0, single buffered']
    #allocation3 [shape = 's32[1]{0}', space=sflag, size = 0x4, scoped, tag = 'scoped memory for tpu_custom_call.1']
    %14 = vsyncpa [#allocation3], 0
    // Predicated region
    $region2: #{tpu_custom_call.1} parent=1 // pred_check
      _
    $region3: #{tpu_custom_call.1} parent=1 // pred_check_branch
      %16 = sbr.rel (0) target = $region5
    $region4: #{tpu_custom_call.1} parent=1 // pred_region
      _
    $region5: #{tpu_custom_call.1} parent=1 // pred_fallthru
      _
    // Predicated region
    $region6: #{tpu_custom_call.1} parent=1 // pred_check
      _
    $region7: #{tpu_custom_call.1} parent=1 // pred_check_branch
      %18 = sbr.rel (0) target = $region9
    $region8: #{tpu_custom_call.1} parent=1 // pred_region
      _
    $region9: #{tpu_custom_call.1} parent=1 // pred_fallthru
      _
    // Predicated region
    $region10: #{tpu_custom_call.1} parent=1 // pred_check
      _
    $region11: #{tpu_custom_call.1} parent=1 // pred_check_branch
      %20 = sbr.rel (0) target = $region13
    $region12: #{tpu_custom_call.1} parent=1 // pred_region
      _
    $region13: #{tpu_custom_call.1} parent=1 // pred_fallthru
      _
    // Predicated region
    $region14: #{tpu_custom_call.1} parent=1 // pred_check
      _
    $region15: #{tpu_custom_call.1} parent=1 // pred_check_branch
      %22 = sbr.rel (0) target = $region17
    $region16: #{tpu_custom_call.1} parent=1 // pred_region
      _
    $region17: #{tpu_custom_call.1} parent=1 // pred_fallthru
      _
    // Predicated region
    $region18: #{tpu_custom_call.1} parent=1 // pred_check
      _
    $region19: #{tpu_custom_call.1} parent=1 // pred_check_branch
      %24 = sbr.rel (0) target = $region21
    $region20: #{tpu_custom_call.1} parent=1 // pred_region
      _
    $region21: #{tpu_custom_call.1} parent=1 // pred_fallthru
      _
    // Predicated region
    $region22: #{tpu_custom_call.1} parent=1 // pred_check
      _
    $region23: #{tpu_custom_call.1} parent=1 // pred_check_branch
      %26 = sbr.rel (0) target = $region25
    $region24: #{tpu_custom_call.1} parent=1 // pred_region
      _
    $region25: #{tpu_custom_call.1} parent=1 // pred_fallthru
      _
    // Predicated region
    $region26: #{tpu_custom_call.1} parent=1 // pred_check
      _
    $region27: #{tpu_custom_call.1} parent=1 // pred_check_branch
      %28 = sbr.rel (0) target = $region29
    $region28: #{tpu_custom_call.1} parent=1 // pred_region
      _
    $region29: #{tpu_custom_call.1} parent=1 // pred_fallthru
      _
    // Predicated region
    $region30: #{tpu_custom_call.1} parent=1 // pred_check
      _
    $region31: #{tpu_custom_call.1} parent=1 // pred_check_branch
      %30 = sbr.rel (0) target = $region33
    $region32: #{tpu_custom_call.1} parent=1 // pred_region
      _
    $region33: #{tpu_custom_call.1} parent=1 // pred_fallthru
      _
    // Predicated region
    $region34: #{tpu_custom_call.1} parent=1 // pred_check
      _
    $region35: #{tpu_custom_call.1} parent=1 // pred_check_branch
      %32 = sbr.rel (0) target = $region37
    $region36: #{tpu_custom_call.1} parent=1 // pred_region
      _
    $region37: #{tpu_custom_call.1} parent=1 // pred_fallthru
      _
    %v33 = vld [vmem:[%s0] sm:$0xff]
    %v34 = vld [vmem:[%s1] sm:$0xff]
    %v35 = vld [vmem:[%s1 + $0x8] sm:$0xff]
    %v36 = vld [vmem:[%s1 + $0x10] sm:$0xff]
    %v37 = vld [vmem:[%s1 + $0x18] sm:$0xff]
    %v38 = vld [vmem:[%s1 + $0x20] sm:$0xff]
    %v39 = vld [vmem:[%s1 + $0x28] sm:$0xff]
    %v40 = vld [vmem:[%s1 + $0x30] sm:$0xff]
    %v41 = vld [vmem:[%s1 + $0x38] sm:$0xff]
    %v42 = vld [vmem:[%s2] sm:$0xff]
    %v43 = vld [vmem:[%s2 + $0x8] sm:$0xff]
    %v44 = vld [vmem:[%s2 + $0x10] sm:$0xff]
    %v45 = vld [vmem:[%s2 + $0x18] sm:$0xff]
    %v46 = vld [vmem:[%s2 + $0x20] sm:$0xff]
    %v47 = vld [vmem:[%s2 + $0x28] sm:$0xff]
    %v48 = vld [vmem:[%s2 + $0x30] sm:$0xff]
    %v49 = vld [vmem:[%s2 + $0x38] sm:$0xff]
    %51 = vset.pattern.permute.xlu0 0
    %52 = vperm.xlu0 %51, %v42
    %v53 = vpop.permute.xlu0 %52
    %56 = vset.pattern.permute.xlu0 0
    %57 = vperm.xlu0 %56, %v43
    %v58 = vpop.permute.xlu0 %57
    %61 = vset.pattern.permute.xlu0 0
    %62 = vperm.xlu0 %61, %v44
    %v63 = vpop.permute.xlu0 %62
    %66 = vset.pattern.permute.xlu0 0
    %67 = vperm.xlu0 %66, %v45
    %v68 = vpop.permute.xlu0 %67
    %71 = vset.pattern.permute.xlu0 0
    %72 = vperm.xlu0 %71, %v46
    %v73 = vpop.permute.xlu0 %72
    %76 = vset.pattern.permute.xlu0 0
    %77 = vperm.xlu0 %76, %v47
    %v78 = vpop.permute.xlu0 %77
    %81 = vset.pattern.permute.xlu0 0
    %82 = vperm.xlu0 %81, %v48
    %v83 = vpop.permute.xlu0 %82
    %86 = vset.pattern.permute.xlu0 0
    %87 = vperm.xlu0 %86, %v49
    %v88 = vpop.permute.xlu0 %87
    %vm90 = vcmask 64512
    %v92 = vsel %vm90, %v34, 0
    %v95 = vsel %vm90, %v35, 0
    %v98 = vsel %vm90, %v36, 0
    %v101 = vsel %vm90, %v37, 0
    %v104 = vsel %vm90, %v38, 0
    %v107 = vsel %vm90, %v39, 0
    %v110 = vsel %vm90, %v40, 0
    %v113 = vsel %vm90, %v41, 0
    %115 = vmatprep.subr.mxu0 0.0
    %116 = vmatpush1.msra.mxu0 0.0
    %117 = vmatprep.subr.mxu0 0.0
    %118 = vmatpush1.msra.mxu0 0.0
    %119 = vmatprep.subr.mxu0 0.0
    %120 = vmatpush1.msra.mxu0 0.0
    %121 = vmatprep.subr.mxu0 0.0
    %122 = vmatpush1.msra.mxu0 0.0
    %123 = vmatprep.subr.mxu0 0.0
    %124 = vmatpush1.msra.mxu0 0.0
    %125 = vmatprep.subr.mxu0 0.0
    %126 = vmatpush1.msra.mxu0 0.0
    %127 = vmatprep.subr.mxu0 0.0
    %128 = vmatpush1.msra.mxu0 0.0
    %129 = vmatprep.subr.mxu0 0.0
    %130 = vmatpush1.msra.mxu0 0.0
    %131 = vmatprep.subr.mxu0 0.0
    %132 = vmatpush1.msra.mxu0 0.0
    %133 = vmatprep.subr.mxu0 0.0
    %134 = vmatpush1.msra.mxu0 0.0
    %135 = vmatprep.subr.mxu0 0.0
    %136 = vmatpush1.msra.mxu0 0.0
    %137 = vmatprep.subr.mxu0 0.0
    %138 = vmatpush1.msra.mxu0 0.0
    %139 = vmatprep.subr.mxu0 0.0
    %140 = vmatpush1.msra.mxu0 0.0
    %141 = vmatprep.subr.mxu0 0.0
    %142 = vmatpush1.msra.mxu0 0.0
    %143 = vmatprep.subr.mxu0 0.0
    %144 = vmatpush1.msra.mxu0 0.0
    %145 = vmatprep.subr.mxu0 0.0
    %146 = vmatpush1.msra.mxu0 %v33
    %147 = vmatprep.subr.mxu0 0.0
    %148 = vmatpush2.msra.mxu0 0.0
    %149 = vmatprep.subr.mxu0 0.0
    %150 = vmatpush2.msra.mxu0 0.0
    %151 = vmatprep.subr.mxu0 0.0
    %152 = vmatpush2.msra.mxu0 0.0
    %153 = vmatprep.subr.mxu0 0.0
    %154 = vmatpush2.msra.mxu0 0.0
    %155 = vmatprep.subr.mxu0 0.0
    %156 = vmatpush2.msra.mxu0 0.0
    %157 = vmatprep.subr.mxu0 0.0
    %158 = vmatpush2.msra.mxu0 0.0
    %159 = vmatprep.subr.mxu0 0.0
    %160 = vmatpush2.msra.mxu0 0.0
    %161 = vmatprep.subr.mxu0 0.0
    %162 = vmatpush2.msra.mxu0 0.0
    %163 = vmatprep.subr.mxu0 0.0
    %164 = vmatpush2.msra.mxu0 0.0
    %165 = vmatprep.subr.mxu0 0.0
    %166 = vmatpush2.msra.mxu0 0.0
    %167 = vmatprep.subr.mxu0 0.0
    %168 = vmatpush2.msra.mxu0 0.0
    %169 = vmatprep.subr.mxu0 0.0
    %170 = vmatpush2.msra.mxu0 0.0
    %171 = vmatprep.subr.mxu0 0.0
    %172 = vmatpush2.msra.mxu0 0.0
    %173 = vmatprep.subr.mxu0 0.0
    %174 = vmatpush2.msra.mxu0 0.0
    %175 = vmatprep.subr.mxu0 0.0
    %176 = vmatpush2.msra.mxu0 0.0
    %177 = vmatprep.subr.mxu0 0.0
    %178 = vmatpush2.msra.mxu0 0.0
    %179 = vmatprep.mubr.f32.mxu0 0.0
    %180 = vmatmul.mubr.f32.gmra.mxu0 %v92
    %v181 = vpop.f32.mrf.mxu0
    %v182 = vadd.f32 %v53, %v181
    %v183 = vpop.f32.mrf.mxu0
    %184 = vmatprep.mubr.f32.mxu0 0.0
    %185 = vmatmul.mubr.f32.gmra.mxu0 %v95
    %v186 = vpop.f32.mrf.mxu0
    %v187 = vadd.f32 %v58, %v186
    %v188 = vpop.f32.mrf.mxu0
    %189 = vmatprep.mubr.f32.mxu0 0.0
    %190 = vmatmul.mubr.f32.gmra.mxu0 %v98
    %v191 = vpop.f32.mrf.mxu0
    %v192 = vadd.f32 %v63, %v191
    %v193 = vpop.f32.mrf.mxu0
    %194 = vmatprep.mubr.f32.mxu0 0.0
    %195 = vmatmul.mubr.f32.gmra.mxu0 %v101
    %v196 = vpop.f32.mrf.mxu0
    %v197 = vadd.f32 %v68, %v196
    %v198 = vpop.f32.mrf.mxu0
    %199 = vmatprep.mubr.f32.mxu0 0.0
    %200 = vmatmul.mubr.f32.gmra.mxu0 %v104
    %v201 = vpop.f32.mrf.mxu0
    %v202 = vadd.f32 %v73, %v201
    %v203 = vpop.f32.mrf.mxu0
    %204 = vmatprep.mubr.f32.mxu0 0.0
    %205 = vmatmul.mubr.f32.gmra.mxu0 %v107
    %v206 = vpop.f32.mrf.mxu0
    %v207 = vadd.f32 %v78, %v206
    %v208 = vpop.f32.mrf.mxu0
    %209 = vmatprep.mubr.f32.mxu0 0.0
    %210 = vmatmul.mubr.f32.gmra.mxu0 %v110
    %v211 = vpop.f32.mrf.mxu0
    %v212 = vadd.f32 %v83, %v211
    %v213 = vpop.f32.mrf.mxu0
    %214 = vmatprep.mubr.f32.mxu0 0.0
    %215 = vmatmul.mubr.f32.gmra.mxu0 %v113
    %v216 = vpop.f32.mrf.mxu0
    %v217 = vadd.f32 %v88, %v216
    %v218 = vpop.f32.mrf.mxu0
    %219 = vdwg.mxu0
    %v220 = vmax.f32 %v182, 0.0
    %v221 = vmax.f32 %v187, 0.0
    %v222 = vmax.f32 %v192, 0.0
    %v223 = vmax.f32 %v197, 0.0
    %v224 = vmax.f32 %v202, 0.0
    %v225 = vmax.f32 %v207, 0.0
    %v226 = vmax.f32 %v212, 0.0
    %v227 = vmax.f32 %v217, 0.0
    %v228 = vld [vmem:[%s3] sm:$0xff]
    %v229 = vld [vmem:[%s3 + $0x8] sm:$0xff]
    %v230 = vld [vmem:[%s3 + $0x10] sm:$0xff]
    %v231 = vld [vmem:[%s3 + $0x18] sm:$0xff]
    %v232 = vld [vmem:[%s4] sm:$0xff]
    %v233 = vld [vmem:[%s4 + $0x8] sm:$0xff]
    %v234 = vld [vmem:[%s4 + $0x10] sm:$0xff]
    %v235 = vld [vmem:[%s4 + $0x18] sm:$0xff]
    %237 = vset.pattern.permute.xlu0 0
    %238 = vperm.xlu0 %237, %v232
    %v239 = vpop.permute.xlu0 %238
    %242 = vset.pattern.permute.xlu0 0
    %243 = vperm.xlu0 %242, %v233
    %v244 = vpop.permute.xlu0 %243
    %247 = vset.pattern.permute.xlu0 0
    %248 = vperm.xlu0 %247, %v234
    %v249 = vpop.permute.xlu0 %248
    %252 = vset.pattern.permute.xlu0 0
    %253 = vperm.xlu0 %252, %v235
    %v254 = vpop.permute.xlu0 %253
    %vm256 = vcmask 523264
    %v258 = vsel %vm256, %v228, 0
    %v261 = vsel %vm256, %v229, 0
    %v264 = vsel %vm256, %v230, 0
    %v267 = vsel %vm256, %v231, 0
    %269 = vmatprep.subr.mxu0 0.0
    %270 = vmatpush1.msra.mxu0 0.0
    %271 = vmatprep.subr.mxu0 0.0
    %272 = vmatpush1.msra.mxu0 0.0
    %273 = vmatprep.subr.mxu0 0.0
    %274 = vmatpush1.msra.mxu0 0.0
    %275 = vmatprep.subr.mxu0 0.0
    %276 = vmatpush1.msra.mxu0 0.0
    %277 = vmatprep.subr.mxu0 0.0
    %278 = vmatpush1.msra.mxu0 0.0
    %279 = vmatprep.subr.mxu0 0.0
    %280 = vmatpush1.msra.mxu0 0.0
    %281 = vmatprep.subr.mxu0 0.0
    %282 = vmatpush1.msra.mxu0 0.0
    %283 = vmatprep.subr.mxu0 0.0
    %284 = vmatpush1.msra.mxu0 0.0
    %285 = vmatprep.subr.mxu0 0.0
    %286 = vmatpush1.msra.mxu0 %v227
    %287 = vmatprep.subr.mxu0 0.0
    %288 = vmatpush1.msra.mxu0 %v226
    %289 = vmatprep.subr.mxu0 0.0
    %290 = vmatpush1.msra.mxu0 %v225
    %291 = vmatprep.subr.mxu0 0.0
    %292 = vmatpush1.msra.mxu0 %v224
    %293 = vmatprep.subr.mxu0 0.0
    %294 = vmatpush1.msra.mxu0 %v223
    %295 = vmatprep.subr.mxu0 0.0
    %296 = vmatpush1.msra.mxu0 %v222
    %297 = vmatprep.subr.mxu0 0.0
    %298 = vmatpush1.msra.mxu0 %v221
    %299 = vmatprep.subr.mxu0 0.0
    %300 = vmatpush1.msra.mxu0 %v220
    %301 = vmatprep.subr.mxu0 0.0
    %302 = vmatpush2.msra.mxu0 0.0
    %303 = vmatprep.subr.mxu0 0.0
    %304 = vmatpush2.msra.mxu0 0.0
    %305 = vmatprep.subr.mxu0 0.0
    %306 = vmatpush2.msra.mxu0 0.0
    %307 = vmatprep.subr.mxu0 0.0
    %308 = vmatpush2.msra.mxu0 0.0
    %309 = vmatprep.subr.mxu0 0.0
    %310 = vmatpush2.msra.mxu0 0.0
    %311 = vmatprep.subr.mxu0 0.0
    %312 = vmatpush2.msra.mxu0 0.0
    %313 = vmatprep.subr.mxu0 0.0
    %314 = vmatpush2.msra.mxu0 0.0
    %315 = vmatprep.subr.mxu0 0.0
    %316 = vmatpush2.msra.mxu0 0.0
    %317 = vmatprep.subr.mxu0 0.0
    %318 = vmatpush2.msra.mxu0 0.0
    %319 = vmatprep.subr.mxu0 0.0
    %320 = vmatpush2.msra.mxu0 0.0
    %321 = vmatprep.subr.mxu0 0.0
    %322 = vmatpush2.msra.mxu0 0.0
    %323 = vmatprep.subr.mxu0 0.0
    %324 = vmatpush2.msra.mxu0 0.0
    %325 = vmatprep.subr.mxu0 0.0
    %326 = vmatpush2.msra.mxu0 0.0
    %327 = vmatprep.subr.mxu0 0.0
    %328 = vmatpush2.msra.mxu0 0.0
    %329 = vmatprep.subr.mxu0 0.0
    %330 = vmatpush2.msra.mxu0 0.0
    %331 = vmatprep.subr.mxu0 0.0
    %332 = vmatpush2.msra.mxu0 0.0
    %333 = vmatprep.mubr.f32.mxu0 0.0
    %334 = vmatmul.mubr.f32.gmra.mxu0 %v258
    %v335 = vpop.f32.mrf.mxu0
    %v336 = vadd.f32 %v239, %v335
    %v337 = vpop.f32.mrf.mxu0
    %338 = vmatprep.mubr.f32.mxu0 0.0
    %339 = vmatmul.mubr.f32.gmra.mxu0 %v261
    %v340 = vpop.f32.mrf.mxu0
    %v341 = vadd.f32 %v244, %v340
    %v342 = vpop.f32.mrf.mxu0
    %343 = vmatprep.mubr.f32.mxu0 0.0
    %344 = vmatmul.mubr.f32.gmra.mxu0 %v264
    %v345 = vpop.f32.mrf.mxu0
    %v346 = vadd.f32 %v249, %v345
    %v347 = vpop.f32.mrf.mxu0
    %348 = vmatprep.mubr.f32.mxu0 0.0
    %349 = vmatmul.mubr.f32.gmra.mxu0 %v267
    %v350 = vpop.f32.mrf.mxu0
    %v351 = vadd.f32 %v254, %v350
    %v352 = vpop.f32.mrf.mxu0
    %353 = vdwg.mxu0
    %v354 = vmax.f32 %v336, 0.0
    %v355 = vmax.f32 %v341, 0.0
    %v356 = vmax.f32 %v346, 0.0
    %v357 = vmax.f32 %v351, 0.0
    %v358 = vld [vmem:[%s5] sm:$0xff]
    %v359 = vld [vmem:[%s5 + $0x8] sm:$0xff]
    %v360 = vld [vmem:[%s6] sm:$0xff]
    %v361 = vld [vmem:[%s6 + $0x8] sm:$0xff]
    %363 = vset.pattern.permute.xlu0 0
    %364 = vperm.xlu0 %363, %v360
    %v365 = vpop.permute.xlu0 %364
    %368 = vset.pattern.permute.xlu0 0
    %369 = vperm.xlu0 %368, %v361
    %v370 = vpop.permute.xlu0 %369
    %vm372 = vcmask 261120
    %v374 = vsel %vm372, %v358, 0
    %v377 = vsel %vm372, %v359, 0
    %379 = vmatprep.subr.mxu0 0.0
    %380 = vmatpush1.msra.mxu0 0.0
    %381 = vmatprep.subr.mxu0 0.0
    %382 = vmatpush1.msra.mxu0 0.0
    %383 = vmatprep.subr.mxu0 0.0
    %384 = vmatpush1.msra.mxu0 0.0
    %385 = vmatprep.subr.mxu0 0.0
    %386 = vmatpush1.msra.mxu0 0.0
    %387 = vmatprep.subr.mxu0 0.0
    %388 = vmatpush1.msra.mxu0 0.0
    %389 = vmatprep.subr.mxu0 0.0
    %390 = vmatpush1.msra.mxu0 0.0
    %391 = vmatprep.subr.mxu0 0.0
    %392 = vmatpush1.msra.mxu0 0.0
    %393 = vmatprep.subr.mxu0 0.0
    %394 = vmatpush1.msra.mxu0 0.0
    %395 = vmatprep.subr.mxu0 0.0
    %396 = vmatpush1.msra.mxu0 0.0
    %397 = vmatprep.subr.mxu0 0.0
    %398 = vmatpush1.msra.mxu0 0.0
    %399 = vmatprep.subr.mxu0 0.0
    %400 = vmatpush1.msra.mxu0 0.0
    %401 = vmatprep.subr.mxu0 0.0
    %402 = vmatpush1.msra.mxu0 0.0
    %403 = vmatprep.subr.mxu0 0.0
    %404 = vmatpush1.msra.mxu0 %v357
    %405 = vmatprep.subr.mxu0 0.0
    %406 = vmatpush1.msra.mxu0 %v356
    %407 = vmatprep.subr.mxu0 0.0
    %408 = vmatpush1.msra.mxu0 %v355
    %409 = vmatprep.subr.mxu0 0.0
    %410 = vmatpush1.msra.mxu0 %v354
    %411 = vmatprep.subr.mxu0 0.0
    %412 = vmatpush2.msra.mxu0 0.0
    %413 = vmatprep.subr.mxu0 0.0
    %414 = vmatpush2.msra.mxu0 0.0
    %415 = vmatprep.subr.mxu0 0.0
    %416 = vmatpush2.msra.mxu0 0.0
    %417 = vmatprep.subr.mxu0 0.0
    %418 = vmatpush2.msra.mxu0 0.0
    %419 = vmatprep.subr.mxu0 0.0
    %420 = vmatpush2.msra.mxu0 0.0
    %421 = vmatprep.subr.mxu0 0.0
    %422 = vmatpush2.msra.mxu0 0.0
    %423 = vmatprep.subr.mxu0 0.0
    %424 = vmatpush2.msra.mxu0 0.0
    %425 = vmatprep.subr.mxu0 0.0
    %426 = vmatpush2.msra.mxu0 0.0
    %427 = vmatprep.subr.mxu0 0.0
    %428 = vmatpush2.msra.mxu0 0.0
    %429 = vmatprep.subr.mxu0 0.0
    %430 = vmatpush2.msra.mxu0 0.0
    %431 = vmatprep.subr.mxu0 0.0
    %432 = vmatpush2.msra.mxu0 0.0
    %433 = vmatprep.subr.mxu0 0.0
    %434 = vmatpush2.msra.mxu0 0.0
    %435 = vmatprep.subr.mxu0 0.0
    %436 = vmatpush2.msra.mxu0 0.0
    %437 = vmatprep.subr.mxu0 0.0
    %438 = vmatpush2.msra.mxu0 0.0
    %439 = vmatprep.subr.mxu0 0.0
    %440 = vmatpush2.msra.mxu0 0.0
    %441 = vmatprep.subr.mxu0 0.0
    %442 = vmatpush2.msra.mxu0 0.0
    %443 = vmatprep.mubr.f32.mxu0 0.0
    %444 = vmatmul.mubr.f32.gmra.mxu0 %v374
    %v445 = vpop.f32.mrf.mxu0
    %v446 = vadd.f32 %v365, %v445
    %v447 = vpop.f32.mrf.mxu0
    %448 = vmatprep.mubr.f32.mxu0 0.0
    %449 = vmatmul.mubr.f32.gmra.mxu0 %v377
    %v450 = vpop.f32.mrf.mxu0
    %v451 = vadd.f32 %v370, %v450
    %v452 = vpop.f32.mrf.mxu0
    %453 = vdwg.mxu0
    %v454 = vmax.f32 %v446, 0.0
    %v455 = vmax.f32 %v451, 0.0
    %v456 = vld [vmem:[%s7] sm:$0xf]
    %v457 = vld [vmem:[%s8] sm:$0xf]
    %459 = vset.pattern.permute.xlu0 0
    %460 = vperm.xlu0 %459, %v457
    %v461 = vpop.permute.xlu0 %460
    %vm463 = vcmask 130048
    %v465 = vsel %vm463, %v456, 0
    %467 = vmatprep.subr.mxu0 0.0
    %468 = vmatpush1.msra.mxu0 0.0
    %469 = vmatprep.subr.mxu0 0.0
    %470 = vmatpush1.msra.mxu0 0.0
    %471 = vmatprep.subr.mxu0 0.0
    %472 = vmatpush1.msra.mxu0 0.0
    %473 = vmatprep.subr.mxu0 0.0
    %474 = vmatpush1.msra.mxu0 0.0
    %475 = vmatprep.subr.mxu0 0.0
    %476 = vmatpush1.msra.mxu0 0.0
    %477 = vmatprep.subr.mxu0 0.0
    %478 = vmatpush1.msra.mxu0 0.0
    %479 = vmatprep.subr.mxu0 0.0
    %480 = vmatpush1.msra.mxu0 0.0
    %481 = vmatprep.subr.mxu0 0.0
    %482 = vmatpush1.msra.mxu0 0.0
    %483 = vmatprep.subr.mxu0 0.0
    %484 = vmatpush1.msra.mxu0 0.0
    %485 = vmatprep.subr.mxu0 0.0
    %486 = vmatpush1.msra.mxu0 0.0
    %487 = vmatprep.subr.mxu0 0.0
    %488 = vmatpush1.msra.mxu0 0.0
    %489 = vmatprep.subr.mxu0 0.0
    %490 = vmatpush1.msra.mxu0 0.0
    %491 = vmatprep.subr.mxu0 0.0
    %492 = vmatpush1.msra.mxu0 0.0
    %493 = vmatprep.subr.mxu0 0.0
    %494 = vmatpush1.msra.mxu0 0.0
    %495 = vmatprep.subr.mxu0 0.0
    %496 = vmatpush1.msra.mxu0 %v455
    %497 = vmatprep.subr.mxu0 0.0
    %498 = vmatpush1.msra.mxu0 %v454
    %499 = vmatprep.subr.mxu0 0.0
    %500 = vmatpush2.msra.mxu0 0.0
    %501 = vmatprep.subr.mxu0 0.0
    %502 = vmatpush2.msra.mxu0 0.0
    %503 = vmatprep.subr.mxu0 0.0
    %504 = vmatpush2.msra.mxu0 0.0
    %505 = vmatprep.subr.mxu0 0.0
    %506 = vmatpush2.msra.mxu0 0.0
    %507 = vmatprep.subr.mxu0 0.0
    %508 = vmatpush2.msra.mxu0 0.0
    %509 = vmatprep.subr.mxu0 0.0
    %510 = vmatpush2.msra.mxu0 0.0
    %511 = vmatprep.subr.mxu0 0.0
    %512 = vmatpush2.msra.mxu0 0.0
    %513 = vmatprep.subr.mxu0 0.0
    %514 = vmatpush2.msra.mxu0 0.0
    %515 = vmatprep.subr.mxu0 0.0
    %516 = vmatpush2.msra.mxu0 0.0
    %517 = vmatprep.subr.mxu0 0.0
    %518 = vmatpush2.msra.mxu0 0.0
    %519 = vmatprep.subr.mxu0 0.0
    %520 = vmatpush2.msra.mxu0 0.0
    %521 = vmatprep.subr.mxu0 0.0
    %522 = vmatpush2.msra.mxu0 0.0
    %523 = vmatprep.subr.mxu0 0.0
    %524 = vmatpush2.msra.mxu0 0.0
    %525 = vmatprep.subr.mxu0 0.0
    %526 = vmatpush2.msra.mxu0 0.0
    %527 = vmatprep.subr.mxu0 0.0
    %528 = vmatpush2.msra.mxu0 0.0
    %529 = vmatprep.subr.mxu0 0.0
    %530 = vmatpush2.msra.mxu0 0.0
    %531 = vmatprep.mubr.f32.mxu0 0.0
    %532 = vmatmul.mubr.f32.gmra.mxu0 %v465
    %v533 = vpop.f32.mrf.mxu0
    %v534 = vadd.f32 %v461, %v533
    %v535 = vpop.f32.mrf.mxu0
    %536 = vdwg.mxu0
    %v537 = vtanh.pop %v534
    %v538 = vmul.f32 %v537, 2.0
    %v539 = vmax.f32 %v534, 0.0
    %v540 = vand.u32 2147483647, %v534
    %v541 = vsub.f32 0.0, %v540
    %v542 = vmul.f32 %v541, 1.442695
    %v543 = vpow.pop %v542
    %v544 = vadd.f32 %v543, 1.0
    %v545 = vlog2.pop %v544
    %v546 = vmul.f32 %v545, 0.6931472
    %v547 = vmul.f32 -0.5, %v543
    %v548 = vadd.f32 %v547, 1.0
    %v549 = vmul.f32 %v548, %v543
    %v550 = vand.u32 2147483647, %v543
    %vm551 = vcmp.lt.f32.partialorder %v550, 0.0004427343
    %v552 = vsel %vm551, %v549, %v546
    %v553 = vadd.f32 %v539, %v552
    %554 = vst [vmem:[#allocation2] sm:$0x3] %v538
    %555 = vst [vmem:[#allocation2] sm:$0xc] %v553
    // Predicated region
    $region38: #{tpu_custom_call.1} parent=1 // pred_check
      _
    $region39: #{tpu_custom_call.1} parent=1 // pred_check_branch
      %557 = sbr.rel (0) target = $region41
    $region40: #{tpu_custom_call.1} parent=1 // pred_region
      %s559 = ssub.s32 64, 64
      %560 = vsyncadd [#allocation3], %s559
      %s562 = sshll.u32 [#allocation2], 4
      %s563 = int_to_ptr.vmem [resolvable:$true] %s562
      %565 = dma.vmem_to_hbm [thread:$0]  %s563, 64, %s9, [#allocation3]
    $region41: #{tpu_custom_call.1} parent=1 // pred_fallthru
      _
    // Predicated region
    $region42: #{tpu_custom_call.1} parent=1 // pred_check
      _
    $region43: #{tpu_custom_call.1} parent=1 // pred_check_branch
      %567 = sbr.rel (0) target = $region45
    $region44: #{tpu_custom_call.1} parent=1 // pred_region
      %568 = dma.done [#allocation3], 64
    $region45: #{tpu_custom_call.1} parent=1 // pred_fallthru
      _
    %569 = vsyncpa [#allocation3], 1

</llo_original>
